<compile_context>
chip_gen: v5e
topology: v5e:2x2
jax: 0.10.0
libtpu: 0.0.40
codegen_flags: <defaults>
</compile_context>

<pallas_src>
import functools

import jax
import jax.numpy as jnp
from jax.experimental import pallas as pl
from jax.experimental.pallas import tpu as pltpu


def _attn_out_kernel(scores_ref, hidden_bf_ref, resid_ref, wt_ref, b_ref,
                     gamma_ref, beta_ref, out_ref, *, eps):
    # scores_ref: (Tq, S) f32    hidden_bf_ref: (S, H) bf16 (matmul only)
    # resid_ref:  (Tq, H) f32    wt_ref: (H, H) bf16 (already W^T)
    # b/gamma/beta: (1, H) f32   out_ref: (Tq, H) f32

    # attention_output = attention_probs @ hidden_states  (dropout = identity)
    scores = scores_ref[...].astype(jnp.bfloat16)            # per-tile cast
    ctx = jnp.dot(scores, hidden_bf_ref[...],
                  preferred_element_type=jnp.float32)         # (Tq, H) f32

    # dense: y = ctx @ W^T + b   (W^T pre-transposed once in the wrapper)
    y = jnp.dot(ctx.astype(jnp.bfloat16), wt_ref[...],
                preferred_element_type=jnp.float32)           # (Tq, H) f32
    y = y + b_ref[...]

    # residual add with the matching f32 rows of hidden_states, then LayerNorm
    z = y + resid_ref[...]

    # two-pass mean / variance along the lane axis (numerically safe)
    mean = jnp.mean(z, axis=-1, keepdims=True)
    d = z - mean
    var = jnp.mean(d * d, axis=-1, keepdims=True)
    inv = jax.lax.rsqrt(var + eps)
    out_ref[...] = (d * inv * gamma_ref[...] + beta_ref[...]).astype(out_ref.dtype)


def _vmem_capacity_bytes():
    """Physical VMEM per core; conservative 64 MiB (v7x) fallback."""
    try:
        info = pltpu.get_tpu_info()
        cap = getattr(info, "vmem_capacity_bytes", None)
        if cap:
            return int(cap)
    except Exception:
        pass
    return 64 * 1024 * 1024


def _working_set_bytes(tq, S, H):
    """Kernel VMEM working set (conservative: everything double-buffered)."""
    return (2 * tq * S * 4        # scores f32 tile
            + 2 * S * H * 2       # hidden bf16, full (resident per batch)
            + 2 * tq * H * 4      # residual f32 tile
            + 2 * H * H * 2       # W^T bf16
            + 2 * tq * H * 4      # output f32 tile
            + 3 * 2 * 8 * max(H, 128) * 4)   # bias/gamma/beta (padded layout)


def _pick_query_tile(S, H, preferred, vmem_budget):
    """Largest safe query tile <= preferred that fits the VMEM budget.

    Never falls back to an (S, S)-sized block; a non-dividing S is handled by
    the caller with pl.cdiv (boundary blocks are padded/masked by Pallas).
    """
    tq = min(preferred, S)
    if tq < S:
        tq = max(8, (tq // 8) * 8)          # sublane multiple for f32 tiles
        while tq > 8 and _working_set_bytes(tq, S, H) > vmem_budget:
            tq = max(8, ((tq // 2) // 8) * 8)
    return tq


def euclidean_attention_with_hyperbolic_scores(
    hidden_states,                 # (B, S, H) float32
    hyperbolic_attention_scores,   # (B, S, S) float32
    dense_w,                       # (H, H)  PyTorch Linear weight layout
    dense_b,                       # (H,)
    ln_gamma,                      # (H,)
    ln_beta,                       # (H,)
    *,
    layer_norm_eps=1e-12,
    query_tile=None,               # None -> generation-aware choice
):
    B, S, H = hidden_states.shape
    assert hyperbolic_attention_scores.shape == (B, S, S)

    vmem_cap = _vmem_capacity_bytes()
    vmem_budget = int(0.8 * vmem_cap)
    if query_tile is None:
        # 128 MiB parts (v5e/v6e): 512-row tiles; 64 MiB parts (v7x): 256.
        preferred = 512 if vmem_cap >= (96 << 20) else 256
    else:
        preferred = query_tile

    tq = _pick_query_tile(S, H, preferred, vmem_budget)
    n_q = pl.cdiv(S, tq)

    # Only the matmul-feeding copies are bf16; residual / LN stay f32.
    hidden_bf = hidden_states.astype(jnp.bfloat16)       # (B, S, H)
    w_t_bf = dense_w.T.astype(jnp.bfloat16)              # pre-transpose once

    b2 = dense_b.reshape(1, H).astype(jnp.float32)
    g2 = ln_gamma.reshape(1, H).astype(jnp.float32)
    be2 = ln_beta.reshape(1, H).astype(jnp.float32)

    kernel = functools.partial(_attn_out_kernel, eps=layer_norm_eps)

    needed = _working_set_bytes(tq, S, H)
    vmem_limit = int(min(0.85 * vmem_cap, max(2 * needed, 32 << 20)))

    cost = pl.CostEstimate(
        flops=2 * B * S * S * H + 2 * B * S * H * H,
        transcendentals=B * S,
        bytes_accessed=(B * S * S * 4        # scores f32
                        + B * S * H * 2      # hidden bf16
                        + B * S * H * 4      # hidden f32 (residual)
                        + H * H * 2          # weight
                        + B * S * H * 4),    # output
    )

    return pl.pallas_call(
        kernel,
        out_shape=jax.ShapeDtypeStruct((B, S, H), hidden_states.dtype),
        grid_spec=pltpu.PrefetchScalarGridSpec(
            num_scalar_prefetch=0,
            grid=(B, n_q),
            in_specs=[
                # scores tile for this (batch, q-tile); batch dim squeezed.
                pl.BlockSpec((None, tq, S), lambda b, q: (b, q, 0)),
                # bf16 hidden, full per batch; constant across q -> resident.
                pl.BlockSpec((None, S, H), lambda b, q: (b, 0, 0)),
                # f32 residual rows for this q-tile only.
                pl.BlockSpec((None, tq, H), lambda b, q: (b, q, 0)),
                # pre-transposed dense weight (bf16), grid-invariant.
                # (On v7x, pipeline_mode=pl.Buffered(1) on these invariant
                #  inputs would shave a second buffer's worth of VMEM.)
                pl.BlockSpec((H, H), lambda b, q: (0, 0)),
                pl.BlockSpec((1, H), lambda b, q: (0, 0)),   # dense bias
                pl.BlockSpec((1, H), lambda b, q: (0, 0)),   # LN gamma
                pl.BlockSpec((1, H), lambda b, q: (0, 0)),   # LN beta
            ],
            out_specs=pl.BlockSpec((None, tq, H), lambda b, q: (b, q, 0)),
        ),
        compiler_params=pltpu.CompilerParams(
            dimension_semantics=("parallel", "parallel"),
            vmem_limit_bytes=vmem_limit,
        ),
        cost_estimate=cost,
    )(hyperbolic_attention_scores, hidden_bf, hidden_states,
      w_t_bf, b2, g2, be2)


def _reference(hidden_states, scores, w, b, gamma, beta, eps=1e-12):
    # Emulates the kernel's bf16 matmul inputs with f32 accumulation.
    scores_bf = scores.astype(jnp.bfloat16)
    hidden_bf = hidden_states.astype(jnp.bfloat16)
    w_t_bf = w.T.astype(jnp.bfloat16)
    ctx = jnp.einsum("bqs,bsh->bqh", scores_bf, hidden_bf,
                     preferred_element_type=jnp.float32)
    y = jnp.einsum("bqh,ho->bqo", ctx.astype(jnp.bfloat16), w_t_bf,
                   preferred_element_type=jnp.float32) + b
    z = y + hidden_states
    mean = jnp.mean(z, axis=-1, keepdims=True)
    var = jnp.mean((z - mean) ** 2, axis=-1, keepdims=True)
    return (z - mean) * jax.lax.rsqrt(var + eps) * gamma + beta


if __name__ == "__main__":
    B, S, H = 2, 8, 32
    eps = 1e-12

    key = jax.random.PRNGKey(0)
    k1, k2, k3, k4 = jax.random.split(key, 4)

    hidden_states = jax.random.normal(k1, (B, S, H), dtype=jnp.float32)
    # Synthetic "hyperbolic attention scores": softmax-normalized so they act
    # like attention probabilities (the module applies them directly via matmul).
    raw_scores = jax.random.normal(k2, (B, S, S), dtype=jnp.float32)
    scores = jax.nn.softmax(raw_scores, axis=-1)

    # Deterministic parameter init (Linear(H, H), LayerNorm(H)).
    dense_w = jax.random.normal(k3, (H, H), dtype=jnp.float32) * 0.02
    dense_b = jax.random.normal(k4, (H,), dtype=jnp.float32) * 0.02
    ln_gamma = jnp.ones((H,), dtype=jnp.float32)
    ln_beta = jnp.zeros((H,), dtype=jnp.float32)

    out = euclidean_attention_with_hyperbolic_scores(
        hidden_states, scores, dense_w, dense_b, ln_gamma, ln_beta,
        layer_norm_eps=eps)
    out = jax.block_until_ready(out)

    ref = _reference(hidden_states, scores, dense_w, dense_b, ln_gamma,
                     ln_beta, eps)
    assert out.shape == (B, S, H)
    # Reference emulates the bf16 MXU feeds (f32 accumulation); remaining
    # delta is accumulation order only.
    assert jnp.allclose(out, ref, atol=5e-3, rtol=5e-3)

    print("KERNEL_OK")
</pallas_src>

<mosaic_0001>
module attributes {stable_mosaic.version = 11 : i64} {
  func.func @_attn_out_kernel(%arg0: i32, %arg1: i32, %arg2: memref<1x8x8xf32, #tpu.memory_space<vmem>>, %arg3: memref<1x8x32xbf16, #tpu.memory_space<vmem>>, %arg4: memref<1x8x32xf32, #tpu.memory_space<vmem>>, %arg5: memref<32x32xbf16, #tpu.memory_space<vmem>>, %arg6: memref<1x32xf32, #tpu.memory_space<vmem>>, %arg7: memref<1x32xf32, #tpu.memory_space<vmem>>, %arg8: memref<1x32xf32, #tpu.memory_space<vmem>>, %arg9: memref<1x8x32xf32, #tpu.memory_space<vmem>>) attributes {dimension_semantics = [#tpu.dimension_semantics<parallel>, #tpu.dimension_semantics<parallel>], iteration_bounds = array<i64: 2, 1>, scalar_prefetch = 0 : i64, scratch_operands = 0 : i64, tpu.core_type = #tpu.core_type<tc>, window_params = [{transform_indices = @transform_0, window_bounds = array<i64: 1, 8, 8>}, {transform_indices = @transform_1, window_bounds = array<i64: 1, 8, 32>}, {transform_indices = @transform_2, window_bounds = array<i64: 1, 8, 32>}, {pipeline_mode = #tpu.pipeline_mode<synchronous>, transform_indices = @transform_3, window_bounds = array<i64: 32, 32>}, {pipeline_mode = #tpu.pipeline_mode<synchronous>, transform_indices = @transform_4, window_bounds = array<i64: 1, 32>}, {pipeline_mode = #tpu.pipeline_mode<synchronous>, transform_indices = @transform_5, window_bounds = array<i64: 1, 32>}, {pipeline_mode = #tpu.pipeline_mode<synchronous>, transform_indices = @transform_6, window_bounds = array<i64: 1, 32>}, {transform_indices = @transform_7, window_bounds = array<i64: 1, 8, 32>}]} {
    %c0 = arith.constant 0 : index
    %c0_0 = arith.constant 0 : index
    %c0_1 = arith.constant 0 : index
    %0 = vector.load %arg2[%c0, %c0_0, %c0_1] : memref<1x8x8xf32, #tpu.memory_space<vmem>>, vector<1x8x8xf32>
    %1 = vector.shape_cast %0 : vector<1x8x8xf32> to vector<8x8xf32>
    %2 = arith.truncf %1 : vector<8x8xf32> to vector<8x8xbf16>
    %c0_2 = arith.constant 0 : index
    %c0_3 = arith.constant 0 : index
    %c0_4 = arith.constant 0 : index
    %3 = vector.load %arg3[%c0_2, %c0_3, %c0_4] : memref<1x8x32xbf16, #tpu.memory_space<vmem>>, vector<1x8x32xbf16>
    %4 = vector.shape_cast %3 : vector<1x8x32xbf16> to vector<8x32xbf16>
    %cst = arith.constant dense<0.000000e+00> : vector<8x32xf32>
    %5 = tpu.matmul %2, %4, %cst {dimension_numbers = #tpu.dot_dimension_numbers<[1], [0], [0], [1], [0, 0, 1, 1], [], []>} : vector<8x8xbf16>, vector<8x32xbf16>, vector<8x32xf32> -> vector<8x32xf32>
    %6 = arith.truncf %5 : vector<8x32xf32> to vector<8x32xbf16>
    %c0_5 = arith.constant 0 : index
    %c0_6 = arith.constant 0 : index
    %7 = vector.load %arg5[%c0_5, %c0_6] : memref<32x32xbf16, #tpu.memory_space<vmem>>, vector<32x32xbf16>
    %cst_7 = arith.constant dense<0.000000e+00> : vector<8x32xf32>
    %8 = tpu.matmul %6, %7, %cst_7 {dimension_numbers = #tpu.dot_dimension_numbers<[1], [0], [0], [1], [0, 0, 1, 1], [], []>} : vector<8x32xbf16>, vector<32x32xbf16>, vector<8x32xf32> -> vector<8x32xf32>
    %c0_8 = arith.constant 0 : index
    %c0_9 = arith.constant 0 : index
    %9 = vector.load %arg6[%c0_8, %c0_9] : memref<1x32xf32, #tpu.memory_space<vmem>>, vector<1x32xf32>
    %10 = vector.broadcast %9 : vector<1x32xf32> to vector<8x32xf32>
    %11 = arith.addf %8, %10 : vector<8x32xf32>
    %c0_10 = arith.constant 0 : index
    %c0_11 = arith.constant 0 : index
    %c0_12 = arith.constant 0 : index
    %12 = vector.load %arg4[%c0_10, %c0_11, %c0_12] : memref<1x8x32xf32, #tpu.memory_space<vmem>>, vector<1x8x32xf32>
    %13 = vector.shape_cast %12 : vector<1x8x32xf32> to vector<8x32xf32>
    %14 = arith.addf %11, %13 : vector<8x32xf32>
    %cst_13 = arith.constant dense<0.000000e+00> : vector<8xf32>
    %15 = vector.multi_reduction <add>, %14, %cst_13 [1] : vector<8x32xf32> to vector<8xf32>
    %16 = vector.shape_cast %15 : vector<8xf32> to vector<8x1xf32>
    %cst_14 = arith.constant 3.200000e+01 : f32
    %17 = vector.broadcast %cst_14 : f32 to vector<8x1xf32>
    %18 = arith.divf %16, %17 : vector<8x1xf32>
    %19 = vector.broadcast %18 : vector<8x1xf32> to vector<8x32xf32>
    %20 = arith.subf %14, %19 : vector<8x32xf32>
    %21 = arith.mulf %20, %20 : vector<8x32xf32>
    %cst_15 = arith.constant dense<0.000000e+00> : vector<8xf32>
    %22 = vector.multi_reduction <add>, %21, %cst_15 [1] : vector<8x32xf32> to vector<8xf32>
    %23 = vector.shape_cast %22 : vector<8xf32> to vector<8x1xf32>
    %cst_16 = arith.constant 3.200000e+01 : f32
    %24 = vector.broadcast %cst_16 : f32 to vector<8x1xf32>
    %25 = arith.divf %23, %24 : vector<8x1xf32>
    %cst_17 = arith.constant 9.99999996E-13 : f32
    %26 = vector.broadcast %cst_17 : f32 to vector<8x1xf32>
    %27 = arith.addf %25, %26 : vector<8x1xf32>
    %28 = math.rsqrt %27 : vector<8x1xf32>
    %29 = vector.broadcast %28 : vector<8x1xf32> to vector<8x32xf32>
    %30 = arith.mulf %20, %29 : vector<8x32xf32>
    %c0_18 = arith.constant 0 : index
    %c0_19 = arith.constant 0 : index
    %31 = vector.load %arg7[%c0_18, %c0_19] : memref<1x32xf32, #tpu.memory_space<vmem>>, vector<1x32xf32>
    %32 = vector.broadcast %31 : vector<1x32xf32> to vector<8x32xf32>
    %33 = arith.mulf %30, %32 : vector<8x32xf32>
    %c0_20 = arith.constant 0 : index
    %c0_21 = arith.constant 0 : index
    %34 = vector.load %arg8[%c0_20, %c0_21] : memref<1x32xf32, #tpu.memory_space<vmem>>, vector<1x32xf32>
    %35 = vector.broadcast %34 : vector<1x32xf32> to vector<8x32xf32>
    %36 = arith.addf %33, %35 : vector<8x32xf32>
    %c0_22 = arith.constant 0 : index
    %c0_23 = arith.constant 0 : index
    %c0_24 = arith.constant 0 : index
    %37 = vector.load %arg9[%c0_22, %c0_23, %c0_24] : memref<1x8x32xf32, #tpu.memory_space<vmem>>, vector<1x8x32xf32>
    %38 = vector.shape_cast %37 : vector<1x8x32xf32> to vector<8x32xf32>
    %39 = vector.shape_cast %36 : vector<8x32xf32> to vector<1x8x32xf32>
    tpu.vector_store %arg9[%c0_22, %c0_23, %c0_24], %39 {strides = array<i32>} : memref<1x8x32xf32, #tpu.memory_space<vmem>>, vector<1x8x32xf32>,
    return
  }
  func.func @transform_0(%arg0: i32, %arg1: i32) -> (i32, i32, i32) {
    %c0_i32 = arith.constant 0 : i32
    %c0_i32_0 = arith.constant 0 : i32
    return %arg0, %arg1, %c0_i32 : i32, i32, i32
  }
  func.func @transform_1(%arg0: i32, %arg1: i32) -> (i32, i32, i32) {
    %c0_i32 = arith.constant 0 : i32
    %c0_i32_0 = arith.constant 0 : i32
    %c0_i32_1 = arith.constant 0 : i32
    return %arg0, %c0_i32, %c0_i32_0 : i32, i32, i32
  }
  func.func @transform_2(%arg0: i32, %arg1: i32) -> (i32, i32, i32) {
    %c0_i32 = arith.constant 0 : i32
    %c0_i32_0 = arith.constant 0 : i32
    return %arg0, %arg1, %c0_i32 : i32, i32, i32
  }
  func.func @transform_3(%arg0: i32, %arg1: i32) -> (i32, i32) {
    %c0_i32 = arith.constant 0 : i32
    %c0_i32_0 = arith.constant 0 : i32
    %c0_i32_1 = arith.constant 0 : i32
    return %c0_i32, %c0_i32_0 : i32, i32
  }
  func.func @transform_4(%arg0: i32, %arg1: i32) -> (i32, i32) {
    %c0_i32 = arith.constant 0 : i32
    %c0_i32_0 = arith.constant 0 : i32
    %c0_i32_1 = arith.constant 0 : i32
    return %c0_i32, %c0_i32_0 : i32, i32
  }
  func.func @transform_5(%arg0: i32, %arg1: i32) -> (i32, i32) {
    %c0_i32 = arith.constant 0 : i32
    %c0_i32_0 = arith.constant 0 : i32
    %c0_i32_1 = arith.constant 0 : i32
    return %c0_i32, %c0_i32_0 : i32, i32
  }
  func.func @transform_6(%arg0: i32, %arg1: i32) -> (i32, i32) {
    %c0_i32 = arith.constant 0 : i32
    %c0_i32_0 = arith.constant 0 : i32
    %c0_i32_1 = arith.constant 0 : i32
    return %c0_i32, %c0_i32_0 : i32, i32
  }
  func.func @transform_7(%arg0: i32, %arg1: i32) -> (i32, i32, i32) {
    %c0_i32 = arith.constant 0 : i32
    %c0_i32_0 = arith.constant 0 : i32
    return %arg0, %arg1, %c0_i32 : i32, i32, i32
  }
}

</mosaic_0001>

<llo_original>
// kernel: tpu_custom_call.1
$region0: #{tpu_custom_call.1}
  #allocation0 [shape = 'u32[]', space=smem, size = 0x4, offset = 0x4, fixed_abs, tag = 'smem constant byte address 0x4 - core index']
  #allocation1 [shape = 'u32[72,128]{1,0:T(1,128)}', space=vmem, size = 0x9000, scoped, tag = 'internal scratch']
  %s0 = inlined_call_operand.hbm [shape: f32[2,8,8], index: 0, kind: input, shape index: {}]
  %s1 = inlined_call_operand.hbm [shape: bf16[2,8,32], index: 1, kind: input, shape index: {}]
  %s2 = inlined_call_operand.hbm [shape: f32[2,8,32], index: 2, kind: input, shape index: {}]
  %s3 = inlined_call_operand.hbm [shape: bf16[32,32], index: 3, kind: input, shape index: {}]
  %s4 = inlined_call_operand.vmem [shape: f32[1,32], index: 4, kind: input, shape index: {}]
  %s5 = inlined_call_operand.vmem [shape: f32[1,32], index: 5, kind: input, shape index: {}]
  %s6 = inlined_call_operand.vmem [shape: f32[1,32], index: 6, kind: input, shape index: {}]
  %s7 = inlined_call_operand.hbm [shape: f32[2,8,32], index: 7, kind: output, shape index: {}]
  %s8 = sld [smem:[#allocation0]]
  $region77: #{tpu_custom_call.1} parent=0
    _
  %s10 = ssub.s32 1, %s8
  %s11 = scalar_select 0, %s10, %s8
  $region1: #{tpu_custom_call.1} parent=0
    #allocation2 [shape = 'u8[8192]{0}', space=vmem, size = 0x2000, scoped, tag = 'input window, operand 0']
    #allocation3 [shape = 's32[2]{0}', space=sflag, size = 0x8, scoped, tag = 'scoped memory for tpu_custom_call.1']
    #allocation4 [shape = 's32[2]{0}', space=sflag, size = 0x8, scoped, tag = 'scoped memory for tpu_custom_call.1']
    #allocation5 [shape = 'u8[4096]{0}', space=vmem, size = 0x1000, scoped, tag = 'input window, operand 1']
    #allocation6 [shape = 's32[2]{0}', space=sflag, size = 0x8, scoped, tag = 'scoped memory for tpu_custom_call.1']
    #allocation7 [shape = 'u8[8192]{0}', space=vmem, size = 0x2000, scoped, tag = 'input window, operand 2']
    #allocation8 [shape = 'u8[8192]{0}', space=vmem, size = 0x2000, scoped, tag = 'input window, operand 3, single buffered']
    #allocation9 [shape = 's32[1]{0}', space=sflag, size = 0x4, scoped, tag = 'scoped memory for tpu_custom_call.1']
    #allocation10 [shape = 'u8[8192]{0}', space=vmem, size = 0x2000, scoped, tag = 'output window, operand 0']
    %12 = vsyncpa [#allocation3], 0
    %s13 = scalar_lea.sflag [#allocation3], 1
    %14 = vsyncpa %s13, 0
    %15 = vsyncpa [#allocation6], 0
    %s16 = scalar_lea.sflag [#allocation6], 1
    %17 = vsyncpa %s16, 0
    %18 = vsyncpa [#allocation9], 0
    %19 = vsyncpa [#allocation4], 0
    %s20 = scalar_lea.sflag [#allocation4], 1
    %21 = vsyncpa %s20, 0
    loop: start=0, step=1, limit=4
    $region2: #{tpu_custom_call.1} parent=1 // loop_pre_header
      _
    $region3: #{tpu_custom_call.1} parent=1 // loop_header
      %s23 = sphi 0, %s27
      %p24 = scmp.ge.s32.totalorder %s23, 4
      %s30 = sphi 0, %s42
      %s31 = sphi 0, %s38
      %s32 = sphi 0, %s30
      %s33 = sphi 0, %s31
      %s34 = sphi 0, %s32
      %s35 = sphi 0, %s33
      %s47 = sphi 0, %s49
      %s50 = sphi 0, %s47
      %s51 = sphi 0, %s50
      %s67 = sphi 0, %s51
      %s73 = sphi 0, %s75
      %s76 = sphi 0, %s73
      %s77 = sphi 0, %s76
      %s93 = sphi 0, %s77
      %s101 = sphi 0, %s103
      %s104 = sphi 0, %s101
      %s105 = sphi 0, %s104
      %s121 = sphi 0, %s105
      %s125 = sphi 0, %s125
      %s127 = sphi 0, %s125
      %s128 = sphi 0, %s127
      %s142 = sphi 0, %s128
      %s146 = sphi 0, %s146
      %s148 = sphi 0, %s146
      %s149 = sphi 0, %s148
      %s163 = sphi 0, %s149
      %s167 = sphi 0, %s167
      %s169 = sphi 0, %s167
      %s170 = sphi 0, %s169
      %s184 = sphi 0, %s170
      %s188 = sphi 0, %s188
      %s190 = sphi 0, %s188
      %s191 = sphi 0, %s190
      %s205 = sphi 0, %s191
      %s213 = sphi 0, %s215
      %s216 = sphi 0, %s213
      %s217 = sphi 0, %s216
      %s233 = sphi 0, %s217
    $region4: #{tpu_custom_call.1} parent=1 // loop_header_branch
      %26 = sbr.rel (%p24) target = $region8
    $region5: #{tpu_custom_call.1} parent=1 // loop_body
      %s28 = ssub.s32 %s23, 1
      %s29 = ssub.s32 %s23, 2
      %s36 = sadd.s32 1, %s31
      %p37 = scmp.ge.s32.totalorder %s36, 1
      %s38 = scalar_select %p37, 0, %s36
      %s39 = sadd.s32 1, %s30
      %s40 = scalar_select %p37, %s39, %s30
      %p41 = scmp.ge.s32.totalorder %s40, 2
      %s42 = scalar_select %p41, 0, %s40
      %s43 = ssub.s32 %s30, %s42
      %s44 = ssub.s32 %s31, %s38
      %s45 = sor.u32 %s43, %s44
      %p46 = scmp.eq.s32.totalorder %s45, 0
      %s48 = sadd.s32 %s47, 1
      %s49 = scalar_select %p46, %s47, %s48
      %p52 = pneg %p46
      %p53 = scmp.eq.s32.totalorder %s23, 1
      %p54 = por %p52, %p53
      %p55 = scmp.ne.s32.totalorder %s47, %s50
      %p56 = scmp.eq.s32.totalorder %s23, 0
      %p57 = por %p55, %p56
      %p58 = scmp.ne.s32.totalorder %s47, %s50
      %p59 = scmp.eq.s32.totalorder %s28, 1
      %p60 = por %p58, %p59
      %p61 = scmp.ne.s32.totalorder %s50, %s51
      %p62 = scmp.eq.s32.totalorder %s28, 0
      %p63 = por %p61, %p62
      %p64 = scmp.ne.s32.totalorder %s50, %s51
      %p65 = scmp.eq.s32.totalorder %s29, 1
      %p66 = por %p64, %p65
      %p68 = scmp.ne.s32.totalorder %s51, %s67
      %p69 = scmp.eq.s32.totalorder %s29, 0
      %p70 = por %p68, %p69
      %s71 = ssub.s32 %s30, %s42
      %p72 = scmp.eq.s32.totalorder %s71, 0
      %s74 = sadd.s32 %s73, 1
      %s75 = scalar_select %p72, %s73, %s74
      %p78 = pneg %p72
      %p79 = scmp.eq.s32.totalorder %s23, 1
      %p80 = por %p78, %p79
      %p81 = scmp.ne.s32.totalorder %s73, %s76
      %p82 = scmp.eq.s32.totalorder %s23, 0
      %p83 = por %p81, %p82
      %p84 = scmp.ne.s32.totalorder %s73, %s76
      %p85 = scmp.eq.s32.totalorder %s28, 1
      %p86 = por %p84, %p85
      %p87 = scmp.ne.s32.totalorder %s76, %s77
      %p88 = scmp.eq.s32.totalorder %s28, 0
      %p89 = por %p87, %p88
      %p90 = scmp.ne.s32.totalorder %s76, %s77
      %p91 = scmp.eq.s32.totalorder %s29, 1
      %p92 = por %p90, %p91
      %p94 = scmp.ne.s32.totalorder %s77, %s93
      %p95 = scmp.eq.s32.totalorder %s29, 0
      %p96 = por %p94, %p95
      %s97 = ssub.s32 %s30, %s42
      %s98 = ssub.s32 %s31, %s38
      %s99 = sor.u32 %s97, %s98
      %p100 = scmp.eq.s32.totalorder %s99, 0
      %s102 = sadd.s32 %s101, 1
      %s103 = scalar_select %p100, %s101, %s102
      %p106 = pneg %p100
      %p107 = scmp.eq.s32.totalorder %s23, 1
      %p108 = por %p106, %p107
      %p109 = scmp.ne.s32.totalorder %s101, %s104
      %p110 = scmp.eq.s32.totalorder %s23, 0
      %p111 = por %p109, %p110
      %p112 = scmp.ne.s32.totalorder %s101, %s104
      %p113 = scmp.eq.s32.totalorder %s28, 1
      %p114 = por %p112, %p113
      %p115 = scmp.ne.s32.totalorder %s104, %s105
      %p116 = scmp.eq.s32.totalorder %s28, 0
      %p117 = por %p115, %p116
      %p118 = scmp.ne.s32.totalorder %s104, %s105
      %p119 = scmp.eq.s32.totalorder %s29, 1
      %p120 = por %p118, %p119
      %p122 = scmp.ne.s32.totalorder %s105, %s121
      %p123 = scmp.eq.s32.totalorder %s29, 0
      %p124 = por %p122, %p123
      %s126 = sadd.s32 %s125, 1
      %p129 = scmp.eq.s32.totalorder %s23, 1
      %p130 = scmp.ne.s32.totalorder %s125, %s127
      %p131 = scmp.eq.s32.totalorder %s23, 0
      %p132 = por %p130, %p131
      %p133 = scmp.ne.s32.totalorder %s125, %s127
      %p134 = scmp.eq.s32.totalorder %s28, 1
      %p135 = por %p133, %p134
      %p136 = scmp.ne.s32.totalorder %s127, %s128
      %p137 = scmp.eq.s32.totalorder %s28, 0
      %p138 = por %p136, %p137
      %p139 = scmp.ne.s32.totalorder %s127, %s128
      %p140 = scmp.eq.s32.totalorder %s29, 1
      %p141 = por %p139, %p140
      %p143 = scmp.ne.s32.totalorder %s128, %s142
      %p144 = scmp.eq.s32.totalorder %s29, 0
      %p145 = por %p143, %p144
      %s147 = sadd.s32 %s146, 1
      %p150 = scmp.eq.s32.totalorder %s23, 1
      %p151 = scmp.ne.s32.totalorder %s146, %s148
      %p152 = scmp.eq.s32.totalorder %s23, 0
      %p153 = por %p151, %p152
      %p154 = scmp.ne.s32.totalorder %s146, %s148
      %p155 = scmp.eq.s32.totalorder %s28, 1
      %p156 = por %p154, %p155
      %p157 = scmp.ne.s32.totalorder %s148, %s149
      %p158 = scmp.eq.s32.totalorder %s28, 0
      %p159 = por %p157, %p158
      %p160 = scmp.ne.s32.totalorder %s148, %s149
      %p161 = scmp.eq.s32.totalorder %s29, 1
      %p162 = por %p160, %p161
      %p164 = scmp.ne.s32.totalorder %s149, %s163
      %p165 = scmp.eq.s32.totalorder %s29, 0
      %p166 = por %p164, %p165
      %s168 = sadd.s32 %s167, 1
      %p171 = scmp.eq.s32.totalorder %s23, 1
      %p172 = scmp.ne.s32.totalorder %s167, %s169
      %p173 = scmp.eq.s32.totalorder %s23, 0
      %p174 = por %p172, %p173
      %p175 = scmp.ne.s32.totalorder %s167, %s169
      %p176 = scmp.eq.s32.totalorder %s28, 1
      %p177 = por %p175, %p176
      %p178 = scmp.ne.s32.totalorder %s169, %s170
      %p179 = scmp.eq.s32.totalorder %s28, 0
      %p180 = por %p178, %p179
      %p181 = scmp.ne.s32.totalorder %s169, %s170
      %p182 = scmp.eq.s32.totalorder %s29, 1
      %p183 = por %p181, %p182
      %p185 = scmp.ne.s32.totalorder %s170, %s184
      %p186 = scmp.eq.s32.totalorder %s29, 0
      %p187 = por %p185, %p186
      %s189 = sadd.s32 %s188, 1
      %p192 = scmp.eq.s32.totalorder %s23, 1
      %p193 = scmp.ne.s32.totalorder %s188, %s190
      %p194 = scmp.eq.s32.totalorder %s23, 0
      %p195 = por %p193, %p194
      %p196 = scmp.ne.s32.totalorder %s188, %s190
      %p197 = scmp.eq.s32.totalorder %s28, 1
      %p198 = por %p196, %p197
      %p199 = scmp.ne.s32.totalorder %s190, %s191
      %p200 = scmp.eq.s32.totalorder %s28, 0
      %p201 = por %p199, %p200
      %p202 = scmp.ne.s32.totalorder %s190, %s191
      %p203 = scmp.eq.s32.totalorder %s29, 1
      %p204 = por %p202, %p203
      %p206 = scmp.ne.s32.totalorder %s191, %s205
      %p207 = scmp.eq.s32.totalorder %s29, 0
      %p208 = por %p206, %p207
      %s209 = ssub.s32 %s30, %s42
      %s210 = ssub.s32 %s31, %s38
      %s211 = sor.u32 %s209, %s210
      %p212 = scmp.eq.s32.totalorder %s211, 0
      %s214 = sadd.s32 %s213, 1
      %s215 = scalar_select %p212, %s213, %s214
      %p218 = pneg %p212
      %p219 = scmp.eq.s32.totalorder %s23, 1
      %p220 = por %p218, %p219
      %p221 = scmp.ne.s32.totalorder %s213, %s216
      %p222 = scmp.eq.s32.totalorder %s23, 0
      %p223 = por %p221, %p222
      %p224 = scmp.ne.s32.totalorder %s213, %s216
      %p225 = scmp.eq.s32.totalorder %s28, 1
      %p226 = por %p224, %p225
      %p227 = scmp.ne.s32.totalorder %s216, %s217
      %p228 = scmp.eq.s32.totalorder %s28, 0
      %p229 = por %p227, %p228
      %p230 = scmp.ne.s32.totalorder %s216, %s217
      %p231 = scmp.eq.s32.totalorder %s29, 1
      %p232 = por %p230, %p231
      %p234 = scmp.ne.s32.totalorder %s217, %s233
      %p235 = scmp.eq.s32.totalorder %s29, 0
      %p236 = por %p234, %p235
      %p237 = scmp.le.s32.totalorder 1, %s23
      %p238 = scmp.lt.s32.totalorder %s23, 3
      %p239 = pnand %p237, %p238
      %p240 = pneg %p239
      // Predicated region
      $region9: #{tpu_custom_call.1} parent=5 // pred_check
        _
      $region10: #{tpu_custom_call.1} parent=5 // pred_check_branch
        %242 = sbr.rel (%p239) target = $region12
      $region11: #{tpu_custom_call.1} parent=5 // pred_region
        %s243 = ssub.s32 %s23, 1
        // Predicated region
        $region13: #{tpu_custom_call.1} parent=11 // pred_check
          %p244 = pneg %p138
        $region14: #{tpu_custom_call.1} parent=11 // pred_check_branch
          %246 = sbr.rel (%p244) target = $region16
        $region15: #{tpu_custom_call.1} parent=11 // pred_region
          %248 = vsyncadd [#allocation9], 0
          %s249 = sshll.u32 %s3, 4
          %s250 = int_to_ptr.hbm [resolvable:$true] %s249
          %s251 = sshll.u32 [#allocation8], 4
          %s252 = int_to_ptr.vmem [resolvable:$true] %s251
          %257 = dma.hbm_to_vmem [thread:$0]  %s250, 256, %s252, [#allocation9], 64, 64, 4
        $region16: #{tpu_custom_call.1} parent=11 // pred_fallthru
          _
        // Predicated region
        $region17: #{tpu_custom_call.1} parent=11 // pred_check
          %p258 = pneg %p159
        $region18: #{tpu_custom_call.1} parent=11 // pred_check_branch
          %260 = sbr.rel (%p258) target = $region20
        $region19: #{tpu_custom_call.1} parent=11 // pred_region
          _
        $region20: #{tpu_custom_call.1} parent=11 // pred_fallthru
          _
        // Predicated region
        $region21: #{tpu_custom_call.1} parent=11 // pred_check
          %p261 = pneg %p180
        $region22: #{tpu_custom_call.1} parent=11 // pred_check_branch
          %263 = sbr.rel (%p261) target = $region24
        $region23: #{tpu_custom_call.1} parent=11 // pred_region
          _
        $region24: #{tpu_custom_call.1} parent=11 // pred_fallthru
          _
        // Predicated region
        $region25: #{tpu_custom_call.1} parent=11 // pred_check
          %p264 = pneg %p201
        $region26: #{tpu_custom_call.1} parent=11 // pred_check_branch
          %266 = sbr.rel (%p264) target = $region28
        $region27: #{tpu_custom_call.1} parent=11 // pred_region
          _
        $region28: #{tpu_custom_call.1} parent=11 // pred_fallthru
          _
      $region12: #{tpu_custom_call.1} parent=5 // pred_fallthru
        _
      %p267 = scmp.lt.s32.totalorder %s23, 2
      // Predicated region
      $region29: #{tpu_custom_call.1} parent=5 // pred_check
        %p268 = pneg %p267
      $region30: #{tpu_custom_call.1} parent=5 // pred_check_branch
        %270 = sbr.rel (%p268) target = $region32
      $region31: #{tpu_custom_call.1} parent=5 // pred_region
        // Predicated region
        $region33: #{tpu_custom_call.1} parent=31 // pred_check
          %p271 = pneg %p57
        $region34: #{tpu_custom_call.1} parent=31 // pred_check_branch
          %273 = sbr.rel (%p271) target = $region36
        $region35: #{tpu_custom_call.1} parent=31 // pred_region
          %s274 = sand.u32 %s47, 1
          %s275 = scalar_lea.sflag [#allocation3], %s274
          %s276 = sand.u32 %s47, 1
          %s277 = smul.addr %s276, 8
          %s278 = scalar_lea.vmem [#allocation2], %s277
          %280 = vsyncadd %s275, 0
          %s281 = sadd.s32 %s31, %s30
          %s282 = smul.addr %s281, 8
          %s283 = scalar_lea.hbm %s0, %s282
          %s285 = sshll.u32 %s283, 4
          %s286 = int_to_ptr.hbm [resolvable:$true] %s285
          %s287 = sshll.u32 %s278, 4
          %s288 = int_to_ptr.vmem [resolvable:$true] %s287
          %290 = dma.hbm_to_vmem [thread:$0]  %s286, 128, %s288, %s275
        $region36: #{tpu_custom_call.1} parent=31 // pred_fallthru
          _
        // Predicated region
        $region37: #{tpu_custom_call.1} parent=31 // pred_check
          %p291 = pneg %p83
        $region38: #{tpu_custom_call.1} parent=31 // pred_check_branch
          %293 = sbr.rel (%p291) target = $region40
        $region39: #{tpu_custom_call.1} parent=31 // pred_region
          %s294 = sand.u32 %s23, 1
          %s295 = scalar_lea.sflag [#allocation6], %s294
          %s296 = sand.u32 %s73, 1
          %s297 = smul.addr %s296, 4
          %s298 = scalar_lea.vmem [#allocation5], %s297
          %300 = vsyncadd %s295, 0
          %s301 = smul.addr %s30, 4
          %s302 = scalar_lea.hbm %s1, %s301
          %s304 = sshll.u32 %s302, 4
          %s305 = int_to_ptr.hbm [resolvable:$true] %s304
          %s306 = sshll.u32 %s298, 4
          %s307 = int_to_ptr.vmem [resolvable:$true] %s306
          %309 = dma.hbm_to_vmem [thread:$0]  %s305, 64, %s307, %s295
        $region40: #{tpu_custom_call.1} parent=31 // pred_fallthru
          _
        // Predicated region
        $region41: #{tpu_custom_call.1} parent=31 // pred_check
          %p310 = pneg %p111
        $region42: #{tpu_custom_call.1} parent=31 // pred_check_branch
          %312 = sbr.rel (%p310) target = $region44
        $region43: #{tpu_custom_call.1} parent=31 // pred_region
          %s313 = sand.u32 %s23, 1
          %s314 = scalar_lea.sflag [#allocation6], %s313
          %s315 = sand.u32 %s101, 1
          %s316 = smul.addr %s315, 8
          %s317 = scalar_lea.vmem [#allocation7], %s316
          %319 = vsyncadd %s314, 0
          %s320 = sadd.s32 %s31, %s30
          %s321 = smul.addr %s320, 8
          %s322 = scalar_lea.hbm %s2, %s321
          %s324 = sshll.u32 %s322, 4
          %s325 = int_to_ptr.hbm [resolvable:$true] %s324
          %s326 = sshll.u32 %s317, 4
          %s327 = int_to_ptr.vmem [resolvable:$true] %s326
          %329 = dma.hbm_to_vmem [thread:$0]  %s325, 128, %s327, %s314
        $region44: #{tpu_custom_call.1} parent=31 // pred_fallthru
          _
      $region32: #{tpu_custom_call.1} parent=5 // pred_fallthru
        _
      %p330 = scmp.le.s32.totalorder 1, %s23
      %p331 = scmp.lt.s32.totalorder %s23, 3
      %p332 = pnand %p330, %p331
      %p333 = pneg %p332
      // Predicated region
      $region45: #{tpu_custom_call.1} parent=5 // pred_check
        _
      $region46: #{tpu_custom_call.1} parent=5 // pred_check_branch
        %335 = sbr.rel (%p332) target = $region48
      $region47: #{tpu_custom_call.1} parent=5 // pred_region
        %s336 = ssub.s32 %s23, 1
        %s337 = sand.u32 %s50, 1
        %s338 = scalar_lea.sflag [#allocation3], %s337
        %s339 = sand.u32 %s50, 1
        %s340 = smul.addr %s339, 8
        %s341 = scalar_lea.vmem [#allocation2], %s340
        // Predicated region
        $region49: #{tpu_custom_call.1} parent=47 // pred_check
          %p342 = pneg %p63
        $region50: #{tpu_custom_call.1} parent=47 // pred_check_branch
          %344 = sbr.rel (%p342) target = $region52
        $region51: #{tpu_custom_call.1} parent=47 // pred_region
          %346 = dma.done %s338, 128
        $region52: #{tpu_custom_call.1} parent=47 // pred_fallthru
          _
        %s347 = sand.u32 %s28, 1
        %s348 = scalar_lea.sflag [#allocation6], %s347
        %s349 = sand.u32 %s76, 1
        %s350 = smul.addr %s349, 4
        %s351 = scalar_lea.vmem [#allocation5], %s350
        // Predicated region
        $region53: #{tpu_custom_call.1} parent=47 // pred_check
          %p352 = pneg %p89
        $region54: #{tpu_custom_call.1} parent=47 // pred_check_branch
          %354 = sbr.rel (%p352) target = $region56
        $region55: #{tpu_custom_call.1} parent=47 // pred_region
          %356 = dma.done %s348, 64
        $region56: #{tpu_custom_call.1} parent=47 // pred_fallthru
          _
        %s357 = sand.u32 %s28, 1
        %s358 = scalar_lea.sflag [#allocation6], %s357
        %s359 = sand.u32 %s104, 1
        %s360 = smul.addr %s359, 8
        %s361 = scalar_lea.vmem [#allocation7], %s360
        // Predicated region
        $region57: #{tpu_custom_call.1} parent=47 // pred_check
          %p362 = pneg %p117
        $region58: #{tpu_custom_call.1} parent=47 // pred_check_branch
          %364 = sbr.rel (%p362) target = $region60
        $region59: #{tpu_custom_call.1} parent=47 // pred_region
          %366 = dma.done %s358, 128
        $region60: #{tpu_custom_call.1} parent=47 // pred_fallthru
          _
        // Predicated region
        $region61: #{tpu_custom_call.1} parent=47 // pred_check
          %p367 = pneg %p138
        $region62: #{tpu_custom_call.1} parent=47 // pred_check_branch
          %369 = sbr.rel (%p367) target = $region64
        $region63: #{tpu_custom_call.1} parent=47 // pred_region
          %371 = dma.done [#allocation9], 256
        $region64: #{tpu_custom_call.1} parent=47 // pred_fallthru
          _
        %s372 = sand.u32 %s50, 1
        %s373 = scalar_lea.sflag [#allocation3], %s372
        %s374 = sand.u32 %s50, 1
        %s375 = smul.addr %s374, 8
        %s376 = scalar_lea.vmem [#allocation2], %s375
        %p377 = pneg %p63
        %p378 = pneg %p60
        %s379 = sand.u32 %s28, 1
        %s380 = scalar_lea.sflag [#allocation6], %s379
        %s381 = sand.u32 %s76, 1
        %s382 = smul.addr %s381, 4
        %s383 = scalar_lea.vmem [#allocation5], %s382
        %p384 = pneg %p89
        %p385 = pneg %p86
        %s386 = sand.u32 %s28, 1
        %s387 = scalar_lea.sflag [#allocation6], %s386
        %s388 = sand.u32 %s104, 1
        %s389 = smul.addr %s388, 8
        %s390 = scalar_lea.vmem [#allocation7], %s389
        %p391 = pneg %p117
        %p392 = pneg %p114
        %p393 = pneg %p138
        %p394 = pneg %p135
        %p395 = pneg %p159
        %p396 = pneg %p156
        %p397 = pneg %p180
        %p398 = pneg %p177
        %p399 = pneg %p201
        %p400 = pneg %p198
        %p401 = pneg %p229
        %p402 = pneg %p226
        %s403 = sand.u32 %s216, 1
        %s404 = scalar_lea.sflag [#allocation4], %s403
        %s405 = sand.u32 %s216, 1
        %s406 = smul.addr %s405, 8
        %s407 = scalar_lea.vmem [#allocation10], %s406
        %v409 = vld [vmem:[%s341] sm:$0xff]
        %v410 = vpack.c.bf16 %v409, %v409
        %v411 = vld [vmem:[%s351] sm:$0xf]
        %vm412 = vcmask 64512
        %v414 = vsel %vm412, %v410, 0
        %vm416 = vcmask 1043456
        %v418 = vsel %vm416, %v411, 0
        %420 = vmatpush.bf16.msra.mxu0 0
        %421 = vmatpush.bf16.msra.mxu0 0
        %422 = vmatpush.bf16.msra.mxu0 0
        %423 = vmatpush.bf16.msra.mxu0 0
        %424 = vmatpush.bf16.msra.mxu0 0
        %425 = vmatpush.bf16.msra.mxu0 0
        %426 = vmatpush.bf16.msra.mxu0 0
        %427 = vmatpush.bf16.msra.mxu0 %v418
        %428 = vmatmul.bf16.gmra.mxu0 %v414
        %v429 = vpop.f32.mrf.mxu0
        %v430 = vadd.f32 0.0, %v429
        %v431 = vpop.f32.mrf.mxu0
        %432 = vdwg.mxu0
        %v433 = vpack.c.bf16 %v430, %v430
        %v434 = vld [vmem:[#allocation8] sm:$0xf]
        %v435 = vld [vmem:[#allocation8 + $0x4] sm:$0xf]
        %v436 = vld [vmem:[#allocation8 + $0x8] sm:$0xf]
        %v437 = vld [vmem:[#allocation8 + $0xc] sm:$0xf]
        %v438 = vld [vmem:[%s4] sm:$0x1]
        %v440 = vperm.slane %v438, 0
        %v446 = vunpack.c.l.b16 %v434
        %v447 = vunpack.c.l.b16 %v435
        %v448 = vunpack.c.l.b16 %v436
        %v449 = vunpack.c.l.b16 %v437
        %v450 = vpack.c.b16 %v447, %v446
        %v451 = vpack.c.b16 %v449, %v448
        %vm454 = vcmask 261120
        %v456 = vsel %vm454, %v433, 0
        %458 = vmatpush.bf16.msra.mxu0 0
        %459 = vmatpush.bf16.msra.mxu0 0
        %460 = vmatpush.bf16.msra.mxu0 0
        %461 = vmatpush.bf16.msra.mxu0 0
        %462 = vmatpush.bf16.msra.mxu0 0
        %463 = vmatpush.bf16.msra.mxu0 0
        %464 = vmatpush.bf16.msra.mxu0 %v451
        %465 = vmatpush.bf16.msra.mxu0 %v450
        %466 = vmatmul.bf16.gmra.mxu0 %v456
        %v467 = vpop.f32.mrf.mxu0
        %v468 = vadd.f32 %v440, %v467
        %v469 = vpop.f32.mrf.mxu0
        %470 = vdwg.mxu0
        %v471 = vld [vmem:[%s361] sm:$0xff]
        %v472 = vadd.f32 %v468, %v471
        %v473 = vsel %vm454, %v472, 0.0
        %474 = vadd.xlane.f32.xlu0 %v473
        %v475 = vpop.xlane.xlu0 %474
        %v476 = vrcp.pop 32.0
        %v477 = vmul.f32 32.0, %v476
        %v478 = vsub.f32 1.0, %v477
        %v479 = vmul.f32 %v476, %v478
        %v480 = vadd.f32 %v476, %v479
        %vm481 = vweird.f32 %v476
        %v482 = vsel %vm481, %v476, %v480
        %v483 = vmul.f32 %v475, %v482
        %v484 = vsub.f32 %v472, %v483
        %v485 = vmul.f32 %v484, %v484
        %v486 = vsel %vm454, %v485, 0.0
        %487 = vadd.xlane.f32.xlu0 %v486
        %v488 = vpop.xlane.xlu0 %487
        %v489 = vmul.f32 %v488, %v482
        %v490 = vadd.f32 %v489, 1e-12
        %v491 = vrsqrt.pop %v490
        %v492 = vmul.f32 %v491, %v490
        %v493 = vmul.f32 %v492, %v491
        %v494 = vmul.f32 0.5, %v493
        %v495 = vsub.f32 1.5, %v494
        %v496 = vmul.f32 %v491, %v495
        %vm497 = vweird.f32 %v490
        %vm498 = vweird.f32 %v491
        %vm499 = vmor %vm497, %vm498
        %v500 = vsel %vm499, %v491, %v496
        %v501 = vmul.f32 %v484, %v500
        %v502 = vld [vmem:[%s5] sm:$0x1]
        %v504 = vperm.slane %v502, 0
        %v506 = vmul.f32 %v501, %v504
        %v507 = vld [vmem:[%s6] sm:$0x1]
        %v509 = vperm.slane %v507, 0
        %v511 = vadd.f32 %v506, %v509
        %512 = vst.msk [vmem:[%s407] sm:$0xff] %vm454, %v511
        %s513 = sand.u32 %s216, 1
        %s514 = scalar_lea.sflag [#allocation4], %s513
        %s515 = sand.u32 %s216, 1
        %s516 = smul.addr %s515, 8
        %s517 = scalar_lea.vmem [#allocation10], %s516
        // Predicated region
        $region65: #{tpu_custom_call.1} parent=47 // pred_check
          %p518 = pneg %p226
        $region66: #{tpu_custom_call.1} parent=47 // pred_check_branch
          %520 = sbr.rel (%p518) target = $region68
        $region67: #{tpu_custom_call.1} parent=47 // pred_region
          %522 = vsyncadd %s514, 0
          %s523 = sadd.s32 %s33, %s32
          %s524 = smul.addr %s523, 8
          %s525 = scalar_lea.hbm %s7, %s524
          %s527 = sshll.u32 %s517, 4
          %s528 = int_to_ptr.vmem [resolvable:$true] %s527
          %s529 = sshll.u32 %s525, 4
          %s530 = int_to_ptr.hbm [resolvable:$true] %s529
          %532 = dma.vmem_to_hbm [thread:$0]  %s528, 128, %s530, %s514
        $region68: #{tpu_custom_call.1} parent=47 // pred_fallthru
          _
      $region48: #{tpu_custom_call.1} parent=5 // pred_fallthru
        _
      %p533 = scmp.le.s32.totalorder 2, %s23
      // Predicated region
      $region69: #{tpu_custom_call.1} parent=5 // pred_check
        %p534 = pneg %p533
      $region70: #{tpu_custom_call.1} parent=5 // pred_check_branch
        %536 = sbr.rel (%p534) target = $region72
      $region71: #{tpu_custom_call.1} parent=5 // pred_region
        %s537 = ssub.s32 %s23, 2
        // Predicated region
        $region73: #{tpu_custom_call.1} parent=71 // pred_check
          %p538 = pneg %p232
        $region74: #{tpu_custom_call.1} parent=71 // pred_check_branch
          %540 = sbr.rel (%p538) target = $region76
        $region75: #{tpu_custom_call.1} parent=71 // pred_region
          %s541 = sand.u32 %s217, 1
          %s542 = scalar_lea.sflag [#allocation4], %s541
          %s543 = sand.u32 %s217, 1
          %s544 = smul.addr %s543, 8
          %s545 = scalar_lea.vmem [#allocation10], %s544
          %547 = dma.done %s542, 128
        $region76: #{tpu_custom_call.1} parent=71 // pred_fallthru
          _
      $region72: #{tpu_custom_call.1} parent=5 // pred_fallthru
        _
    $region6: #{tpu_custom_call.1} parent=1 // loop_footer
      %s27 = sadd.s32 1, %s23
    $region7: #{tpu_custom_call.1} parent=1 // loop_footer_branch
      %22 = sbr.rel target = $region3
    $region8: #{tpu_custom_call.1} parent=1 // loop_exit
      _
    %548 = vsyncpa [#allocation3], 1
    %s549 = scalar_lea.sflag [#allocation3], 1
    %550 = vsyncpa %s549, 1
    %551 = vsyncpa [#allocation6], 1
    %s552 = scalar_lea.sflag [#allocation6], 1
    %553 = vsyncpa %s552, 1
    %554 = vsyncpa [#allocation9], 1
    %555 = vsyncpa [#allocation4], 1
    %s556 = scalar_lea.sflag [#allocation4], 1
    %557 = vsyncpa %s556, 1

</llo_original>
